<compile_context>
chip_gen: v7x
topology: tpu7x:2x2x1
jax: 0.10.0
libtpu: 0.0.40
codegen_flags: <defaults>
</compile_context>

<pallas_src>
import numbers
import string
from collections import defaultdict

import numpy as np
import jax
import jax.numpy as jnp
from jax import lax
from jax.experimental import pallas as pl
from jax.experimental.pallas import tpu as pltpu

ALL_CHARACTERS = string.printable
N_CHARACTERS = len(ALL_CHARACTERS)   # 100
MEM_DIM = 128                        # module default mem_dim
_MAX_LSTM_ROWS = 8192                # cap on s_pad * b_pad rows (gx = 16 MiB f32)
_MAX_LSTM_BATCH = 128                # target batch width for the string LSTM


def _next_pow2(n):
    return 1 if n <= 1 else 1 << (int(n) - 1).bit_length()


# --------------------------------------------------------------------------
# Pallas kernels
# --------------------------------------------------------------------------

def _string_lstm_kernel(maxlen_ref, x_ref, lens_ref, wih_ref, whh_ref, b_ref,
                        h_out_ref, gx_scr, h_scr, c_scr):
    """Batched single-layer LSTM over B padded strings (gate order i,f,g,o).

    x_ref    : (S_pad*B, D) bf16, seq-major (row = t*B + b) embedded chars
    lens_ref : (B, 1) int32 true lengths (len-0 rows are pure padding)
    wih_ref  : (D, 4D) bf16 = weight_ih_l0.T
    whh_ref  : (D, 4D) bf16 = weight_hh_l0.T
    b_ref    : (1, 4D) f32  = bias_ih_l0 + bias_hh_l0
    h_out    : (B, D)  f32 final hidden state per string
    """
    B, D = h_scr.shape

    # Hoisted input projection: one dense MXU matmul for all timesteps, so the
    # serial recurrence only carries the h @ W_hh matmul.
    gx_scr[...] = (
        jnp.dot(x_ref[...], wih_ref[...], preferred_element_type=jnp.float32)
        + b_ref[...])

    h_scr[...] = jnp.zeros_like(h_scr)
    c_scr[...] = jnp.zeros_like(c_scr)
    lens = lens_ref[...]                                   # (B, 1) int32

    # TODO(synk): when B is forced small (few strings for a path), pin W_hh in
    # the MXU across timesteps via pltpu.matmul_push_rhs/acc_lhs/pop instead of
    # re-issuing jnp.dot each step.
    def step(t, carry):
        row = pl.multiple_of(t * B, B)                     # B is a multiple of 8
        gates = gx_scr[pl.ds(row, B), :] + jnp.dot(
            h_scr[...].astype(jnp.bfloat16), whh_ref[...],
            preferred_element_type=jnp.float32)            # (B, 4D) f32
        i = jax.nn.sigmoid(gates[:, 0:D])
        f = jax.nn.sigmoid(gates[:, D:2 * D])
        g = jnp.tanh(gates[:, 2 * D:3 * D])
        o = jax.nn.sigmoid(gates[:, 3 * D:4 * D])
        c_new = f * c_scr[...] + i * g
        h_new = o * jnp.tanh(c_new)
        active = t < lens                                  # (B, 1) mask
        c_scr[...] = jnp.where(active, c_new, c_scr[...])
        h_scr[...] = jnp.where(active, h_new, h_scr[...])
        return carry

    lax.fori_loop(0, maxlen_ref[0], step, 0)
    h_out_ref[...] = h_scr[...]


@jax.jit
def string_lstm_forward(maxlen, x, lens, wih_t, whh_t, bias):
    rows, D = x.shape
    B = lens.shape[0]
    return pl.pallas_call(
        _string_lstm_kernel,
        out_shape=jax.ShapeDtypeStruct((B, D), jnp.float32),
        in_specs=[
            pl.BlockSpec(memory_space=pltpu.MemorySpace.SMEM),   # maxlen (1,)
            pl.BlockSpec(memory_space=pltpu.MemorySpace.VMEM),   # x
            pl.BlockSpec(memory_space=pltpu.MemorySpace.VMEM),   # lens
            pl.BlockSpec(memory_space=pltpu.MemorySpace.VMEM),   # W_ih^T
            pl.BlockSpec(memory_space=pltpu.MemorySpace.VMEM),   # W_hh^T
            pl.BlockSpec(memory_space=pltpu.MemorySpace.VMEM),   # bias
        ],
        out_specs=pl.BlockSpec(memory_space=pltpu.MemorySpace.VMEM),
        scratch_shapes=[
            pltpu.VMEM((rows, 4 * D), jnp.float32),  # hoisted x @ W_ih + b
            pltpu.VMEM((B, D), jnp.float32),         # h
            pltpu.VMEM((B, D), jnp.float32),         # c
        ],
    )(maxlen, x, lens, wih_t, whh_t, bias)
    # TODO(synk): chunk the hoisted x@W_ih projection for strings longer than
    # ~1024 characters so the gx scratch stays bounded on v7x's smaller VMEM.
    # TODO(synk): on v7x, split the batch across the two TensorCores with a
    # grid=(2,) + dimension_semantics=("parallel",) (no-op on v5e/v6e).


def _object_kernel(c_ref, h_ref, w_comb_ref, fh_b_ref, iouh_b_ref,
                   lout_w_ref, lout_b_ref, out_ref):
    """Fused child-sum TreeLSTM node (embedObject).

    c_ref/h_ref : (N_pad, D) f32 child states; zero-padded rows are harmless
                  (their g rows are 0, so fc = sigmoid(fh_b)*0 = 0 and they add
                  nothing to the iou column sum).
    w_comb_ref  : (D, 4D) bf16 = [fh_w^T | iouh_w^T] fused weight.
    out_ref     : (2, D) f32 -> row 0 = c, row 1 = h_hat.
    """
    D = out_ref.shape[-1]
    child_c = c_ref[...]
    child_h = h_ref[...].astype(jnp.bfloat16)
    # One MXU matmul covers both the per-child forget gates and the iou
    # projection of hs_bar (linearity: hs_bar @ W == sum_j h_j @ W).
    g = jnp.dot(child_h, w_comb_ref[...],
                preferred_element_type=jnp.float32)        # (N_pad, 4D)
    f = g[:, 0:D] + fh_b_ref[...]
    fc_sum = jnp.sum(jax.nn.sigmoid(f) * child_c, axis=0, keepdims=True)
    iou = jnp.sum(g[:, D:4 * D], axis=0, keepdims=True) + iouh_b_ref[...]
    i = jax.nn.sigmoid(iou[:, 0:D])
    o = jax.nn.sigmoid(iou[:, D:2 * D])
    u = jnp.tanh(iou[:, 2 * D:3 * D])
    c_new = i * u + fc_sum
    h_new = o * jnp.tanh(c_new)
    h_hat = jnp.dot(h_new.astype(jnp.bfloat16), lout_w_ref[...],
                    preferred_element_type=jnp.float32) + lout_b_ref[...]
    out_ref[0:1, :] = c_new
    out_ref[1:2, :] = h_hat


@jax.jit
def object_forward(child_c, child_h, w_comb, fh_b, iouh_b, lout_w, lout_b):
    D = child_h.shape[1]
    return pl.pallas_call(
        _object_kernel,
        out_shape=jax.ShapeDtypeStruct((2, D), jnp.float32),
        in_specs=[pl.BlockSpec(memory_space=pltpu.MemorySpace.VMEM)] * 7,
        out_specs=pl.BlockSpec(memory_space=pltpu.MemorySpace.VMEM),
    )(child_c, child_h, w_comb, fh_b, iouh_b, lout_w, lout_b)


def _array_kernel(n_ref, ch_ref, wih_ref, whh_ref, b_ref,
                  out_ref, gx_scr, h_scr, c_scr):
    """Fused LSTMCell(2D -> D) recurrence over children (embedArray).

    ch_ref  : (N_pad, 2D) f32 = [child_c | child_h] per row.
    wih_ref : (2D, 4D) bf16   = weight_ih.T (single fused matrix).
    whh_ref : (D, 4D)  bf16   = weight_hh.T
    out_ref : (2, D) f32 -> row 0 = c, row 1 = h.
    """
    D = h_scr.shape[-1]
    # Hoisted input projection for ALL children: one (N,256)x(256,512) matmul.
    gx_scr[...] = (
        jnp.dot(ch_ref[...].astype(jnp.bfloat16), wih_ref[...],
                preferred_element_type=jnp.float32)
        + b_ref[...])

    h_scr[...] = jnp.zeros_like(h_scr)
    c_scr[...] = jnp.zeros_like(c_scr)

    def step(t, carry):
        gates = gx_scr[pl.ds(t, 1), :] + jnp.dot(
            h_scr[...].astype(jnp.bfloat16), whh_ref[...],
            preferred_element_type=jnp.float32)
        i = jax.nn.sigmoid(gates[:, 0:D])
        f = jax.nn.sigmoid(gates[:, D:2 * D])
        g = jnp.tanh(gates[:, 2 * D:3 * D])
        o = jax.nn.sigmoid(gates[:, 3 * D:4 * D])
        c_new = f * c_scr[...] + i * g
        h_new = o * jnp.tanh(c_new)
        c_scr[...] = c_new
        h_scr[...] = h_new
        return carry

    lax.fori_loop(0, n_ref[0], step, 0)
    out_ref[0:1, :] = c_scr[...]
    out_ref[1:2, :] = h_scr[...]


@jax.jit
def array_forward(n, child_ch, wih_t, whh_t, bias):
    N = child_ch.shape[0]
    D = child_ch.shape[1] // 2
    return pl.pallas_call(
        _array_kernel,
        out_shape=jax.ShapeDtypeStruct((2, D), jnp.float32),
        in_specs=[pl.BlockSpec(memory_space=pltpu.MemorySpace.SMEM)]      # n
                 + [pl.BlockSpec(memory_space=pltpu.MemorySpace.VMEM)] * 4,
        out_specs=pl.BlockSpec(memory_space=pltpu.MemorySpace.VMEM),
        scratch_shapes=[
            pltpu.VMEM((N, 4 * D), jnp.float32),   # hoisted [c,h] @ W_ih + b
            pltpu.VMEM((1, D), jnp.float32),       # h
            pltpu.VMEM((1, D), jnp.float32),       # c
        ],
    )(n, child_ch, wih_t, whh_t, bias)


# --------------------------------------------------------------------------
# JSONTreeLSTM (JAX / Pallas port)
# --------------------------------------------------------------------------

class JSONTreeLSTMPallas:
    def __init__(self, mem_dim=MEM_DIM, seed=0):
        self.mem_dim = mem_dim
        self._base_key = jax.random.PRNGKey(seed)
        self._param_counter = 0
        # nn.Embedding(n_characters, mem_dim) ~ N(0, 1)
        self.string_encoder = jax.random.normal(
            self._next_key(), (N_CHARACTERS, mem_dim), dtype=jnp.float32)
        self.string_rnn = {}           # canon path -> (W_ih^T, W_hh^T, bias)
        self.array_lstm = {}           # canon path -> (W_ih^T(2D,4D), W_hh^T, bias)
        self.iouh = {}                 # key -> (W^T, b)
        self.fh = {}
        self.lout = {}                 # canon path -> (W^T bf16, b)
        self._object_shared = None     # (W_comb bf16, fh_b, iouh_b)
        self.numberEmbeddings = {}     # canon path -> (W^T, b)
        self.numberStats = defaultdict(list)
        self._zero = np.zeros((1, mem_dim), dtype=np.float32)

    # ---- deterministic lazy parameter creation ----
    def _next_key(self):
        k = jax.random.fold_in(self._base_key, self._param_counter)
        self._param_counter += 1
        return k

    def _uniform(self, key, shape, bound):
        return jax.random.uniform(key, shape, jnp.float32, -bound, bound)

    def _linear_params(self, in_features, out_features):
        bound = 1.0 / np.sqrt(in_features)
        k1, k2 = jax.random.split(self._next_key())
        w_t = self._uniform(k1, (in_features, out_features), bound)
        b = self._uniform(k2, (1, out_features), bound)
        return w_t, b

    def _get_fh(self, key):
        if key not in self.fh:
            self.fh[key] = self._linear_params(self.mem_dim, self.mem_dim)
        return self.fh[key]

    def _get_iouh(self, key):
        if key not in self.iouh:
            self.iouh[key] = self._linear_params(self.mem_dim, 3 * self.mem_dim)
        return self.iouh[key]

    def _get_object_shared(self):
        # fh / iouh always use '___default___' in the reference, so the fused
        # [fh_w | iouh_w] bf16 matrix is built once.
        if self._object_shared is None:
            fh_w, fh_b = self._get_fh('___default___')
            iouh_w, iouh_b = self._get_iouh('___default___')
            w_comb = jnp.concatenate([fh_w, iouh_w], axis=1).astype(jnp.bfloat16)
            self._object_shared = (w_comb, fh_b, iouh_b)
        return self._object_shared

    def _get_lout(self, key):
        if key not in self.lout:
            w_t, b = self._linear_params(self.mem_dim, self.mem_dim)
            self.lout[key] = (w_t.astype(jnp.bfloat16), b)
        return self.lout[key]

    def _get_number_embedding(self, key):
        if key not in self.numberEmbeddings:
            self.numberEmbeddings[key] = self._linear_params(1, self.mem_dim)
        return self.numberEmbeddings[key]

    def _get_string_rnn(self, key):
        if key not in self.string_rnn:
            D = self.mem_dim
            bound = 1.0 / np.sqrt(D)
            k1, k2, k3, k4 = jax.random.split(self._next_key(), 4)
            wih_t = self._uniform(k1, (D, 4 * D), bound).astype(jnp.bfloat16)
            whh_t = self._uniform(k2, (D, 4 * D), bound).astype(jnp.bfloat16)
            b = (self._uniform(k3, (1, 4 * D), bound)
                 + self._uniform(k4, (1, 4 * D), bound))
            self.string_rnn[key] = (wih_t, whh_t, b)
        return self.string_rnn[key]

    def _get_array_lstm(self, key):
        if key not in self.array_lstm:
            D = self.mem_dim
            bound = 1.0 / np.sqrt(D)
            k1, k2, k3, k4 = jax.random.split(self._next_key(), 4)
            wih_t = self._uniform(k1, (2 * D, 4 * D), bound).astype(jnp.bfloat16)
            whh_t = self._uniform(k2, (D, 4 * D), bound).astype(jnp.bfloat16)
            b = (self._uniform(k3, (1, 4 * D), bound)
                 + self._uniform(k4, (1, 4 * D), bound))
            self.array_lstm[key] = (wih_t, whh_t, b)
        return self.array_lstm[key]

    # ---- canonical path (matches the PyTorch module) ----
    def _canonical(self, path):
        path = list(path[-2:])
        for i in range(len(path)):
            if isinstance(path[i], numbers.Number):
                path[i] = '___list___'
        return tuple(path)

    # ---- forward: pass 1 batches all leaves, pass 2 combines the tree ----
    def forward(self, node):
        self._leaf_cache = {}
        self._string_jobs = defaultdict(list)
        self._number_jobs = defaultdict(list)
        self._collect_leaves(node, ['___root___'])
        self._run_leaf_batches()
        result = self.embedNode(node, path=['___root___'])
        if result is None:
            return jnp.asarray(np.concatenate([self._zero, self._zero], axis=1))
        c, h = result
        return jnp.asarray(np.concatenate([c, h], axis=1))

    # pass 1: gather string/number leaves (numbers update running stats in
    # traversal order exactly as the PyTorch module does).
    def _collect_leaves(self, node, path):
        if isinstance(node, dict):
            for name, child in node.items():
                self._collect_leaves(child, path + [name])
            return
        if isinstance(node, list):
            for i, child in enumerate(node):
                self._collect_leaves(child, path + [i])
            return
        if isinstance(node, str):
            if node != '':
                self._string_jobs[self._canonical(path)].append((tuple(path), node))
            return
        if isinstance(node, numbers.Number):
            key = self._canonical(path)
            if len(self.numberStats[key]) < 100:
                self.numberStats[key].append(node)
            val = node - np.mean(self.numberStats[key])
            if len(self.numberStats[key]) > 3:
                std = np.std(self.numberStats[key])
                if not np.allclose(std, 0.0):
                    val = val / std
            self._number_jobs[key].append((tuple(path), float(val)))

    def _run_leaf_batches(self):
        D = self.mem_dim

        # numbers: one vectorized Linear(1, D) per canonical path; results are
        # pulled to numpy ONCE per path (no per-leaf device slices).
        for canon, jobs in self._number_jobs.items():
            w_t, b = self._get_number_embedding(canon)      # (1, D), (1, D)
            vals = jnp.asarray(np.array([v for _, v in jobs], dtype=np.float32))
            embs = np.asarray(vals[:, None] * w_t + b)       # (K, D) numpy
            for i, (pathkey, _) in enumerate(jobs):
                self._leaf_cache[pathkey] = embs[i:i + 1, :]

        # strings: batched LSTM per canonical path.  Strings are sorted by
        # length (desc) and padded up to a shared s_pad per chunk so the batch
        # width reaches up to _MAX_LSTM_BATCH (the per-step W_hh push is
        # amortized over all rows); mixing short strings into a long chunk is
        # free because short rows are masked once past their length.
        for canon, jobs in self._string_jobs.items():
            wih_t, whh_t, bias = self._get_string_rnn(canon)
            items = sorted(jobs, key=lambda kv: len(kv[1]), reverse=True)
            start = 0
            while start < len(items):
                s_pad = max(8, _next_pow2(len(items[start][1])))
                max_b = max(8, min(_MAX_LSTM_BATCH,
                                   (_MAX_LSTM_ROWS // s_pad) // 8 * 8))
                chunk = items[start:start + max_b]
                start += len(chunk)
                b_pad = max(8, _next_pow2(len(chunk)))
                idx = np.zeros((s_pad, b_pad), dtype=np.int32)
                lens = np.zeros((b_pad, 1), dtype=np.int32)
                for bi, (pathkey, s) in enumerate(chunk):
                    lens[bi, 0] = len(s)
                    for ci, ch in enumerate(s):
                        pos = ALL_CHARACTERS.find(ch)
                        if pos >= 0:           # unknown chars keep index 0,
                            idx[ci, bi] = pos  # exactly like the reference
                x = jnp.take(self.string_encoder,
                             jnp.asarray(idx.reshape(-1)), axis=0)
                x = x.astype(jnp.bfloat16)                  # (s_pad*b_pad, D)
                maxlen = jnp.asarray([int(lens.max())], dtype=jnp.int32)
                h_out = np.asarray(string_lstm_forward(
                    maxlen, x, jnp.asarray(lens), wih_t, whh_t, bias))
                for bi, (pathkey, _) in enumerate(chunk):
                    self._leaf_cache[pathkey] = h_out[bi:bi + 1, :]

    # pass 2: tree combination (same traversal as the PyTorch module).
    def embedNode(self, node, path=[]):
        if isinstance(node, dict):
            child_states = []
            for child_name, child in node.items():
                cs = self.embedNode(child, path + [child_name])
                if cs is None:
                    continue
                child_states.append(cs)
            if not child_states:
                return None
            return self.embedObject(child_states, path)
        if isinstance(node, list):
            child_states = []
            for i, child in enumerate(node):
                cs = self.embedNode(child, path + [i])
                if cs is None:
                    continue
                child_states.append(cs)
            if not child_states:
                return None
            return self.embedArray(child_states, path)
        elif isinstance(node, str):
            return self.embedString(node, path)
        elif isinstance(node, numbers.Number):
            return self.embedNumber(node, path)
        else:
            return None

    def _stack_children(self, child_states):
        # Pure-numpy stacking: child states are host arrays, so this costs no
        # per-node XLA dispatches; one device transfer happens inside the
        # container pallas_call wrapper.
        cs = np.concatenate([c for c, _ in child_states], axis=0)
        hs = np.concatenate([h for _, h in child_states], axis=0)
        n = cs.shape[0]
        n_pad = max(8, _next_pow2(n))       # bucket N to cap compiled variants
        if n_pad != n:
            cs = np.pad(cs, ((0, n_pad - n), (0, 0)))
            hs = np.pad(hs, ((0, n_pad - n), (0, 0)))
        return cs, hs, n

    # TODO(synk): container nodes are still one pallas_call per node; batching
    # all object/array nodes of a tree level into one call (scalar-prefetched
    # per-node child offsets + per-path weight indices) would remove the
    # per-node dispatch overhead that dominates large trees.
    def embedObject(self, child_states, path):
        canon = self._canonical(path)
        cs, hs, _ = self._stack_children(child_states)
        w_comb, fh_b, iouh_b = self._get_object_shared()
        lout_w, lout_b = self._get_lout(canon)
        out = np.asarray(object_forward(cs, hs, w_comb, fh_b, iouh_b,
                                        lout_w, lout_b))
        return (out[0:1, :], out[1:2, :])

    def embedArray(self, child_states, path):
        canon = self._canonical(path)
        cs, hs, n = self._stack_children(child_states)
        ch = np.concatenate([cs, hs], axis=1)       # (N_pad, 2D) [c | h]
        wih_t, whh_t, bias = self._get_array_lstm(canon)
        out = np.asarray(array_forward(np.asarray([n], dtype=np.int32),
                                       ch, wih_t, whh_t, bias))
        return (out[0:1, :], out[1:2, :])

    def embedString(self, s, path):
        if s == '':
            return (self._zero, self._zero)
        return (self._zero, self._leaf_cache[tuple(path)])

    def embedNumber(self, num, path):
        # stats were already updated (in traversal order) during pass 1
        return (self._zero, self._leaf_cache[tuple(path)])


# --------------------------------------------------------------------------
# demo
# --------------------------------------------------------------------------

if __name__ == "__main__":
    key = jax.random.PRNGKey(0)
    vals = np.asarray(jax.random.uniform(key, (4,), jnp.float32) * 10.0)

    model = JSONTreeLSTMPallas(mem_dim=MEM_DIM, seed=0)

    example = {
        "name": "hello world",
        "score": float(vals[0]),
        "tags": ["ab", "cd", "ef"],
        "meta": {
            "count": int(round(float(vals[1]))),
            "ratio": float(vals[2]),
            "desc": "xyz",
        },
        "values": [float(vals[3]), 1.0, 2.5, 4.25],
    }

    out = model.forward(example)
    out = jax.block_until_ready(out)

    assert out.shape == (1, 2 * MEM_DIM), out.shape
    assert out.dtype == jnp.float32
    assert np.all(np.isfinite(np.asarray(out)))
    print("KERNEL_OK")
</pallas_src>

<mosaic_0001>
module attributes {stable_mosaic.version = 11 : i64} {
  func.func @_string_lstm_kernel(%arg0: memref<1xi32, #tpu.memory_space<smem>>, %arg1: memref<128x128xbf16, #tpu.memory_space<vmem>>, %arg2: memref<8x1xi32, #tpu.memory_space<vmem>>, %arg3: memref<128x512xbf16, #tpu.memory_space<vmem>>, %arg4: memref<128x512xbf16, #tpu.memory_space<vmem>>, %arg5: memref<1x512xf32, #tpu.memory_space<vmem>>, %arg6: memref<8x128xf32, #tpu.memory_space<vmem>>, %arg7: memref<128x512xf32, #tpu.memory_space<vmem>>, %arg8: memref<8x128xf32, #tpu.memory_space<vmem>>, %arg9: memref<8x128xf32, #tpu.memory_space<vmem>>) attributes {dimension_semantics = [], scalar_prefetch = 0 : i64, scratch_operands = 3 : i64, tpu.core_type = #tpu.core_type<tc>} {
    %c0 = arith.constant 0 : index
    %c0_0 = arith.constant 0 : index
    %0 = vector.load %arg1[%c0, %c0_0] : memref<128x128xbf16, #tpu.memory_space<vmem>>, vector<128x128xbf16>
    %c0_1 = arith.constant 0 : index
    %c0_2 = arith.constant 0 : index
    %1 = vector.load %arg3[%c0_1, %c0_2] : memref<128x512xbf16, #tpu.memory_space<vmem>>, vector<128x512xbf16>
    %cst = arith.constant dense<0.000000e+00> : vector<128x512xf32>
    %2 = tpu.matmul %0, %1, %cst {dimension_numbers = #tpu.dot_dimension_numbers<[1], [0], [0], [1], [0, 0, 1, 1], [], []>} : vector<128x128xbf16>, vector<128x512xbf16>, vector<128x512xf32> -> vector<128x512xf32>
    %c0_3 = arith.constant 0 : index
    %c0_4 = arith.constant 0 : index
    %3 = vector.load %arg5[%c0_3, %c0_4] : memref<1x512xf32, #tpu.memory_space<vmem>>, vector<1x512xf32>
    %4 = vector.broadcast %3 : vector<1x512xf32> to vector<128x512xf32>
    %5 = arith.addf %2, %4 : vector<128x512xf32>
    %c0_5 = arith.constant 0 : index
    %c0_6 = arith.constant 0 : index
    %6 = vector.load %arg7[%c0_5, %c0_6] : memref<128x512xf32, #tpu.memory_space<vmem>>, vector<128x512xf32>
    tpu.vector_store %arg7[%c0_5, %c0_6], %5 {strides = array<i32>} : memref<128x512xf32, #tpu.memory_space<vmem>>, vector<128x512xf32>,
    %cst_7 = arith.constant 0.000000e+00 : f32
    %7 = vector.broadcast %cst_7 : f32 to vector<8x128xf32>
    %c0_8 = arith.constant 0 : index
    %c0_9 = arith.constant 0 : index
    %8 = vector.load %arg8[%c0_8, %c0_9] : memref<8x128xf32, #tpu.memory_space<vmem>>, vector<8x128xf32>
    tpu.vector_store %arg8[%c0_8, %c0_9], %7 {strides = array<i32>} : memref<8x128xf32, #tpu.memory_space<vmem>>, vector<8x128xf32>,
    %cst_10 = arith.constant 0.000000e+00 : f32
    %9 = vector.broadcast %cst_10 : f32 to vector<8x128xf32>
    %c0_11 = arith.constant 0 : index
    %c0_12 = arith.constant 0 : index
    %10 = vector.load %arg9[%c0_11, %c0_12] : memref<8x128xf32, #tpu.memory_space<vmem>>, vector<8x128xf32>
    tpu.vector_store %arg9[%c0_11, %c0_12], %9 {strides = array<i32>} : memref<8x128xf32, #tpu.memory_space<vmem>>, vector<8x128xf32>,
    %c0_13 = arith.constant 0 : index
    %c0_14 = arith.constant 0 : index
    %11 = vector.load %arg2[%c0_13, %c0_14] : memref<8x1xi32, #tpu.memory_space<vmem>>, vector<8x1xi32>
    %c0_15 = arith.constant 0 : index
    %12 = memref.load %arg0[%c0_15] : memref<1xi32, #tpu.memory_space<smem>>
    %c0_i32 = arith.constant 0 : i32
    %c0_i32_16 = arith.constant 0 : i32
    %13 = arith.subi %12, %c0_i32_16 : i32
    %14 = arith.addi %c0_i32_16, %13 : i32
    %c1_i32 = arith.constant 1 : i32
    scf.for %arg10 = %c0_i32_16 to %14 step %c1_i32  : i32 {
      %c8_i32 = arith.constant 8 : i32
      %17 = arith.muli %arg10, %c8_i32 : i32
      %18 = tpu.assume_multiple %17, 8 : i32
      %19 = arith.index_cast %18 : i32 to index
      %c0_21 = arith.constant 0 : index
      %20 = vector.load %arg7[%19, %c0_21] : memref<128x512xf32, #tpu.memory_space<vmem>>, vector<8x512xf32>
      %c0_22 = arith.constant 0 : index
      %c0_23 = arith.constant 0 : index
      %21 = vector.load %arg8[%c0_22, %c0_23] : memref<8x128xf32, #tpu.memory_space<vmem>>, vector<8x128xf32>
      %22 = arith.truncf %21 : vector<8x128xf32> to vector<8x128xbf16>
      %c0_24 = arith.constant 0 : index
      %c0_25 = arith.constant 0 : index
      %23 = vector.load %arg4[%c0_24, %c0_25] : memref<128x512xbf16, #tpu.memory_space<vmem>>, vector<128x512xbf16>
      %cst_26 = arith.constant dense<0.000000e+00> : vector<8x512xf32>
      %24 = tpu.matmul %22, %23, %cst_26 {dimension_numbers = #tpu.dot_dimension_numbers<[1], [0], [0], [1], [0, 0, 1, 1], [], []>} : vector<8x128xbf16>, vector<128x512xbf16>, vector<8x512xf32> -> vector<8x512xf32>
      %25 = arith.addf %20, %24 : vector<8x512xf32>
      %26 = vector.extract_strided_slice %25 {offsets = [0, 0], sizes = [8, 128], strides = [1, 1]} : vector<8x512xf32> to vector<8x128xf32>
      %27 = arith.negf %26 : vector<8x128xf32>
      %28 = math.exp %27 : vector<8x128xf32>
      %cst_27 = arith.constant 1.000000e+00 : f32
      %29 = vector.broadcast %cst_27 : f32 to vector<8x128xf32>
      %30 = arith.addf %29, %28 : vector<8x128xf32>
      %31 = arith.divf %29, %30 : vector<8x128xf32>
      %32 = vector.extract_strided_slice %25 {offsets = [0, 128], sizes = [8, 128], strides = [1, 1]} : vector<8x512xf32> to vector<8x128xf32>
      %33 = arith.negf %32 : vector<8x128xf32>
      %34 = math.exp %33 : vector<8x128xf32>
      %cst_28 = arith.constant 1.000000e+00 : f32
      %35 = vector.broadcast %cst_28 : f32 to vector<8x128xf32>
      %36 = arith.addf %35, %34 : vector<8x128xf32>
      %37 = arith.divf %35, %36 : vector<8x128xf32>
      %38 = vector.extract_strided_slice %25 {offsets = [0, 256], sizes = [8, 128], strides = [1, 1]} : vector<8x512xf32> to vector<8x128xf32>
      %39 = math.tanh %38 : vector<8x128xf32>
      %40 = vector.extract_strided_slice %25 {offsets = [0, 384], sizes = [8, 128], strides = [1, 1]} : vector<8x512xf32> to vector<8x128xf32>
      %41 = arith.negf %40 : vector<8x128xf32>
      %42 = math.exp %41 : vector<8x128xf32>
      %cst_29 = arith.constant 1.000000e+00 : f32
      %43 = vector.broadcast %cst_29 : f32 to vector<8x128xf32>
      %44 = arith.addf %43, %42 : vector<8x128xf32>
      %45 = arith.divf %43, %44 : vector<8x128xf32>
      %c0_30 = arith.constant 0 : index
      %c0_31 = arith.constant 0 : index
      %46 = vector.load %arg9[%c0_30, %c0_31] : memref<8x128xf32, #tpu.memory_space<vmem>>, vector<8x128xf32>
      %47 = arith.mulf %37, %46 : vector<8x128xf32>
      %48 = arith.mulf %31, %39 : vector<8x128xf32>
      %49 = arith.addf %47, %48 : vector<8x128xf32>
      %50 = math.tanh %49 : vector<8x128xf32>
      %51 = arith.mulf %45, %50 : vector<8x128xf32>
      %52 = vector.broadcast %arg10 : i32 to vector<8x1xi32>
      %53 = arith.cmpi slt, %52, %11 : vector<8x1xi32>
      %c0_32 = arith.constant 0 : index
      %c0_33 = arith.constant 0 : index
      %54 = vector.load %arg9[%c0_32, %c0_33] : memref<8x128xf32, #tpu.memory_space<vmem>>, vector<8x128xf32>
      %55 = vector.shape_cast %53 : vector<8x1xi1> to vector<8x1xi1>
      %56 = vector.broadcast %55 : vector<8x1xi1> to vector<8x128xi1>
      %57 = arith.select %56, %49, %54 : vector<8x128xi1>, vector<8x128xf32>
      %c0_34 = arith.constant 0 : index
      %c0_35 = arith.constant 0 : index
      %58 = vector.load %arg9[%c0_34, %c0_35] : memref<8x128xf32, #tpu.memory_space<vmem>>, vector<8x128xf32>
      tpu.vector_store %arg9[%c0_34, %c0_35], %57 {strides = array<i32>} : memref<8x128xf32, #tpu.memory_space<vmem>>, vector<8x128xf32>,
      %c0_36 = arith.constant 0 : index
      %c0_37 = arith.constant 0 : index
      %59 = vector.load %arg8[%c0_36, %c0_37] : memref<8x128xf32, #tpu.memory_space<vmem>>, vector<8x128xf32>
      %60 = vector.shape_cast %53 : vector<8x1xi1> to vector<8x1xi1>
      %61 = vector.broadcast %60 : vector<8x1xi1> to vector<8x128xi1>
      %62 = arith.select %61, %51, %59 : vector<8x128xi1>, vector<8x128xf32>
      %c0_38 = arith.constant 0 : index
      %c0_39 = arith.constant 0 : index
      %63 = vector.load %arg8[%c0_38, %c0_39] : memref<8x128xf32, #tpu.memory_space<vmem>>, vector<8x128xf32>
      tpu.vector_store %arg8[%c0_38, %c0_39], %62 {strides = array<i32>} : memref<8x128xf32, #tpu.memory_space<vmem>>, vector<8x128xf32>,
    }
    %c0_17 = arith.constant 0 : index
    %c0_18 = arith.constant 0 : index
    %15 = vector.load %arg8[%c0_17, %c0_18] : memref<8x128xf32, #tpu.memory_space<vmem>>, vector<8x128xf32>
    %c0_19 = arith.constant 0 : index
    %c0_20 = arith.constant 0 : index
    %16 = vector.load %arg6[%c0_19, %c0_20] : memref<8x128xf32, #tpu.memory_space<vmem>>, vector<8x128xf32>
    tpu.vector_store %arg6[%c0_19, %c0_20], %15 {strides = array<i32>} : memref<8x128xf32, #tpu.memory_space<vmem>>, vector<8x128xf32>,
    return
  }
}

</mosaic_0001>

<llo_original>
// kernel: string_lstm_forward.1
$region0: #{string_lstm_forward.1}
  #allocation0 [shape = 'u32[]', space=smem, size = 0x4, offset = 0x4, fixed_abs, tag = 'smem constant byte address 0x4 - core index']
  #allocation1 [shape = 'u32[144,128]{1,0:T(1,128)}', space=vmem, size = 0x12000, scoped, tag = 'internal scratch']
  #allocation2 [shape = 'f32[128,512]{1,0:T(8,128)}', space=vmem, size = 0x40000, scoped, tag = 'scratch operand']
  #allocation3 [shape = 'f32[8,128]{1,0:T(8,128)}', space=vmem, size = 0x1000, scoped, tag = 'scratch operand']
  #allocation4 [shape = 'f32[8,128]{1,0:T(8,128)}', space=vmem, size = 0x1000, scoped, tag = 'scratch operand']
  #allocation5 [shape = 's32[1]{0:T(128)S(6)}', space=smem, size = 0x200, scoped, tag = 'scoped memory for string_lstm_forward.1']
  %s0 = inlined_call_operand.<no memory space> [shape: s32[1], index: 0, kind: input, shape index: {}]
  %s1 = inlined_call_operand.hbm [shape: bf16[128,128], index: 1, kind: input, shape index: {}]
  %s2 = inlined_call_operand.vmem [shape: s32[8,1], index: 2, kind: input, shape index: {}]
  %s3 = inlined_call_operand.hbm [shape: bf16[128,512], index: 3, kind: input, shape index: {}]
  %s4 = inlined_call_operand.hbm [shape: bf16[128,512], index: 4, kind: input, shape index: {}]
  %s5 = inlined_call_operand.vmem [shape: f32[1,512], index: 5, kind: input, shape index: {}]
  %s6 = inlined_call_operand.hbm [shape: f32[8,128], index: 6, kind: output, shape index: {}]
  %s7 = sld [smem:[#allocation0]]
  $region53: #{string_lstm_forward.1} parent=0
    _
  %s9 = ssub.s32 1, %s7
  %s10 = scalar_select 0, %s9, %s7
  %11 = sst [smem:[#allocation5]] %s0
  $region1: #{string_lstm_forward.1} parent=0
    #allocation6 [shape = 'u8[32768]{0}', space=vmem, size = 0x8000, scoped, tag = 'input window, operand 1, single buffered']
    #allocation7 [shape = 's32[1]{0}', space=sflag, size = 0x4, scoped, tag = 'scoped memory for string_lstm_forward.1']
    #allocation8 [shape = 's32[1]{0}', space=sflag, size = 0x4, scoped, tag = 'scoped memory for string_lstm_forward.1']
    #allocation9 [shape = 'u8[131072]{0}', space=vmem, size = 0x20000, scoped, tag = 'input window, operand 3, single buffered']
    #allocation10 [shape = 's32[1]{0}', space=sflag, size = 0x4, scoped, tag = 'scoped memory for string_lstm_forward.1']
    #allocation11 [shape = 'u8[131072]{0}', space=vmem, size = 0x20000, scoped, tag = 'input window, operand 4, single buffered']
    #allocation12 [shape = 'u8[4096]{0}', space=vmem, size = 0x1000, scoped, tag = 'output window, operand 0, single buffered']
    %12 = vsyncpa [#allocation7], 0
    %13 = vsyncpa [#allocation10], 0
    %14 = vsyncpa [#allocation8], 0
    // Predicated region
    $region2: #{string_lstm_forward.1} parent=1 // pred_check
      _
    $region3: #{string_lstm_forward.1} parent=1 // pred_check_branch
      %16 = sbr.rel (0) target = $region5
    $region4: #{string_lstm_forward.1} parent=1 // pred_region
      _
    $region5: #{string_lstm_forward.1} parent=1 // pred_fallthru
      _
    // Predicated region
    $region6: #{string_lstm_forward.1} parent=1 // pred_check
      _
    $region7: #{string_lstm_forward.1} parent=1 // pred_check_branch
      %18 = sbr.rel (0) target = $region9
    $region8: #{string_lstm_forward.1} parent=1 // pred_region
      %s20 = ssub.s32 1024, 1024
      %21 = vsyncadd [#allocation7], %s20
      %s22 = sshll.u32 [#allocation6], 4
      %s23 = int_to_ptr.vmem [resolvable:$true] %s22
      %28 = dma.hbm_to_vmem [thread:$0]  %s1, 1024, %s23, [#allocation7], 64, 64, 4
    $region9: #{string_lstm_forward.1} parent=1 // pred_fallthru
      _
    // Predicated region
    $region10: #{string_lstm_forward.1} parent=1 // pred_check
      _
    $region11: #{string_lstm_forward.1} parent=1 // pred_check_branch
      %30 = sbr.rel (0) target = $region13
    $region12: #{string_lstm_forward.1} parent=1 // pred_region
      _
    $region13: #{string_lstm_forward.1} parent=1 // pred_fallthru
      _
    // Predicated region
    $region14: #{string_lstm_forward.1} parent=1 // pred_check
      _
    $region15: #{string_lstm_forward.1} parent=1 // pred_check_branch
      %32 = sbr.rel (0) target = $region17
    $region16: #{string_lstm_forward.1} parent=1 // pred_region
      %s34 = ssub.s32 4096, 4096
      %35 = vsyncadd [#allocation10], %s34
      %s36 = sshll.u32 [#allocation9], 4
      %s37 = int_to_ptr.vmem [resolvable:$true] %s36
      %42 = dma.hbm_to_vmem [thread:$0]  %s3, 4096, %s37, [#allocation10], 256, 256, 16
    $region17: #{string_lstm_forward.1} parent=1 // pred_fallthru
      _
    // Predicated region
    $region18: #{string_lstm_forward.1} parent=1 // pred_check
      _
    $region19: #{string_lstm_forward.1} parent=1 // pred_check_branch
      %44 = sbr.rel (0) target = $region21
    $region20: #{string_lstm_forward.1} parent=1 // pred_region
      %s46 = ssub.s32 4096, 4096
      %47 = vsyncadd [#allocation10], %s46
      %s48 = sshll.u32 [#allocation11], 4
      %s49 = int_to_ptr.vmem [resolvable:$true] %s48
      %54 = dma.hbm_to_vmem [thread:$0]  %s4, 4096, %s49, [#allocation10], 256, 256, 16
    $region21: #{string_lstm_forward.1} parent=1 // pred_fallthru
      _
    // Predicated region
    $region22: #{string_lstm_forward.1} parent=1 // pred_check
      _
    $region23: #{string_lstm_forward.1} parent=1 // pred_check_branch
      %56 = sbr.rel (0) target = $region25
    $region24: #{string_lstm_forward.1} parent=1 // pred_region
      _
    $region25: #{string_lstm_forward.1} parent=1 // pred_fallthru
      _
    // Predicated region
    $region26: #{string_lstm_forward.1} parent=1 // pred_check
      _
    $region27: #{string_lstm_forward.1} parent=1 // pred_check_branch
      %58 = sbr.rel (0) target = $region29
    $region28: #{string_lstm_forward.1} parent=1 // pred_region
      %59 = dma.done [#allocation7], 1024
    $region29: #{string_lstm_forward.1} parent=1 // pred_fallthru
      _
    // Predicated region
    $region30: #{string_lstm_forward.1} parent=1 // pred_check
      _
    $region31: #{string_lstm_forward.1} parent=1 // pred_check_branch
      %61 = sbr.rel (0) target = $region33
    $region32: #{string_lstm_forward.1} parent=1 // pred_region
      %62 = dma.done [#allocation10], 4096
    $region33: #{string_lstm_forward.1} parent=1 // pred_fallthru
      _
    // Predicated region
    $region34: #{string_lstm_forward.1} parent=1 // pred_check
      _
    $region35: #{string_lstm_forward.1} parent=1 // pred_check_branch
      %64 = sbr.rel (0) target = $region37
    $region36: #{string_lstm_forward.1} parent=1 // pred_region
      %65 = dma.done [#allocation10], 4096
    $region37: #{string_lstm_forward.1} parent=1 // pred_fallthru
      _
    %v67 = vld [vmem:[#allocation6] sm:$0xf]
    %v68 = vld [vmem:[#allocation6 + $0x4] sm:$0xf]
    %v69 = vld [vmem:[#allocation6 + $0x8] sm:$0xf]
    %v70 = vld [vmem:[#allocation6 + $0xc] sm:$0xf]
    %v71 = vld [vmem:[#allocation6 + $0x10] sm:$0xf]
    %v72 = vld [vmem:[#allocation6 + $0x14] sm:$0xf]
    %v73 = vld [vmem:[#allocation6 + $0x18] sm:$0xf]
    %v74 = vld [vmem:[#allocation6 + $0x1c] sm:$0xf]
    %v75 = vld [vmem:[#allocation6 + $0x20] sm:$0xf]
    %v76 = vld [vmem:[#allocation6 + $0x24] sm:$0xf]
    %v77 = vld [vmem:[#allocation6 + $0x28] sm:$0xf]
    %v78 = vld [vmem:[#allocation6 + $0x2c] sm:$0xf]
    %v79 = vld [vmem:[#allocation6 + $0x30] sm:$0xf]
    %v80 = vld [vmem:[#allocation6 + $0x34] sm:$0xf]
    %v81 = vld [vmem:[#allocation6 + $0x38] sm:$0xf]
    %v82 = vld [vmem:[#allocation6 + $0x3c] sm:$0xf]
    %v83 = vld [vmem:[#allocation9] sm:$0xff]
    %v84 = vld [vmem:[#allocation9 + $0x8] sm:$0xff]
    %v85 = vld [vmem:[#allocation9 + $0x10] sm:$0xff]
    %v86 = vld [vmem:[#allocation9 + $0x18] sm:$0xff]
    %v87 = vld [vmem:[#allocation9 + $0x20] sm:$0xff]
    %v88 = vld [vmem:[#allocation9 + $0x28] sm:$0xff]
    %v89 = vld [vmem:[#allocation9 + $0x30] sm:$0xff]
    %v90 = vld [vmem:[#allocation9 + $0x38] sm:$0xff]
    %v91 = vld [vmem:[#allocation9 + $0x40] sm:$0xff]
    %v92 = vld [vmem:[#allocation9 + $0x48] sm:$0xff]
    %v93 = vld [vmem:[#allocation9 + $0x50] sm:$0xff]
    %v94 = vld [vmem:[#allocation9 + $0x58] sm:$0xff]
    %v95 = vld [vmem:[#allocation9 + $0x60] sm:$0xff]
    %v96 = vld [vmem:[#allocation9 + $0x68] sm:$0xff]
    %v97 = vld [vmem:[#allocation9 + $0x70] sm:$0xff]
    %v98 = vld [vmem:[#allocation9 + $0x78] sm:$0xff]
    %v99 = vld [vmem:[#allocation9 + $0x80] sm:$0xff]
    %v100 = vld [vmem:[#allocation9 + $0x88] sm:$0xff]
    %v101 = vld [vmem:[#allocation9 + $0x90] sm:$0xff]
    %v102 = vld [vmem:[#allocation9 + $0x98] sm:$0xff]
    %v103 = vld [vmem:[#allocation9 + $0xa0] sm:$0xff]
    %v104 = vld [vmem:[#allocation9 + $0xa8] sm:$0xff]
    %v105 = vld [vmem:[#allocation9 + $0xb0] sm:$0xff]
    %v106 = vld [vmem:[#allocation9 + $0xb8] sm:$0xff]
    %v107 = vld [vmem:[#allocation9 + $0xc0] sm:$0xff]
    %v108 = vld [vmem:[#allocation9 + $0xc8] sm:$0xff]
    %v109 = vld [vmem:[#allocation9 + $0xd0] sm:$0xff]
    %v110 = vld [vmem:[#allocation9 + $0xd8] sm:$0xff]
    %v111 = vld [vmem:[#allocation9 + $0xe0] sm:$0xff]
    %v112 = vld [vmem:[#allocation9 + $0xe8] sm:$0xff]
    %v113 = vld [vmem:[#allocation9 + $0xf0] sm:$0xff]
    %v114 = vld [vmem:[#allocation9 + $0xf8] sm:$0xff]
    %v115 = vld [vmem:[%s5] sm:$0xf]
    %v117 = vlaneseq
    %v118 = vshrl.u32 %v117, 7
    %v119 = vsub.s32 0, %v118
    %v120 = vrot.slane %v115, %v119
    %v121 = vlaneseq
    %v122 = vshrl.u32 %v121, 7
    %v123 = vsub.s32 1, %v122
    %v124 = vrot.slane %v115, %v123
    %v125 = vlaneseq
    %v126 = vshrl.u32 %v125, 7
    %v127 = vsub.s32 2, %v126
    %v128 = vrot.slane %v115, %v127
    %v129 = vlaneseq
    %v130 = vshrl.u32 %v129, 7
    %v131 = vsub.s32 3, %v130
    %v132 = vrot.slane %v115, %v131
    %v153 = vunpack.c.l.b16 %v67
    %v154 = vunpack.c.l.b16 %v68
    %v155 = vunpack.c.l.b16 %v69
    %v156 = vunpack.c.l.b16 %v70
    %v157 = vunpack.c.l.b16 %v71
    %v158 = vunpack.c.l.b16 %v72
    %v159 = vunpack.c.l.b16 %v73
    %v160 = vunpack.c.l.b16 %v74
    %v161 = vunpack.c.l.b16 %v75
    %v162 = vunpack.c.l.b16 %v76
    %v163 = vunpack.c.l.b16 %v77
    %v164 = vunpack.c.l.b16 %v78
    %v165 = vunpack.c.l.b16 %v79
    %v166 = vunpack.c.l.b16 %v80
    %v167 = vunpack.c.l.b16 %v81
    %v168 = vunpack.c.l.b16 %v82
    %v169 = vpack.c.b16 %v154, %v153
    %v170 = vpack.c.b16 %v156, %v155
    %v171 = vpack.c.b16 %v158, %v157
    %v172 = vpack.c.b16 %v160, %v159
    %v173 = vpack.c.b16 %v162, %v161
    %v174 = vpack.c.b16 %v164, %v163
    %v175 = vpack.c.b16 %v166, %v165
    %v176 = vpack.c.b16 %v168, %v167
    %v217 = vunpack.c.l.b16 %v83
    %v218 = vunpack.c.h.b16 %v83
    %v219 = vunpack.c.l.b16 %v84
    %v220 = vunpack.c.h.b16 %v84
    %v221 = vunpack.c.l.b16 %v85
    %v222 = vunpack.c.h.b16 %v85
    %v223 = vunpack.c.l.b16 %v86
    %v224 = vunpack.c.h.b16 %v86
    %v225 = vunpack.c.l.b16 %v87
    %v226 = vunpack.c.h.b16 %v87
    %v227 = vunpack.c.l.b16 %v88
    %v228 = vunpack.c.h.b16 %v88
    %v229 = vunpack.c.l.b16 %v89
    %v230 = vunpack.c.h.b16 %v89
    %v231 = vunpack.c.l.b16 %v90
    %v232 = vunpack.c.h.b16 %v90
    %v233 = vunpack.c.l.b16 %v91
    %v234 = vunpack.c.h.b16 %v91
    %v235 = vunpack.c.l.b16 %v92
    %v236 = vunpack.c.h.b16 %v92
    %v237 = vunpack.c.l.b16 %v93
    %v238 = vunpack.c.h.b16 %v93
    %v239 = vunpack.c.l.b16 %v94
    %v240 = vunpack.c.h.b16 %v94
    %v241 = vunpack.c.l.b16 %v95
    %v242 = vunpack.c.h.b16 %v95
    %v243 = vunpack.c.l.b16 %v96
    %v244 = vunpack.c.h.b16 %v96
    %v245 = vunpack.c.l.b16 %v97
    %v246 = vunpack.c.h.b16 %v97
    %v247 = vunpack.c.l.b16 %v98
    %v248 = vunpack.c.h.b16 %v98
    %v249 = vunpack.c.l.b16 %v99
    %v250 = vunpack.c.h.b16 %v99
    %v251 = vunpack.c.l.b16 %v100
    %v252 = vunpack.c.h.b16 %v100
    %v253 = vunpack.c.l.b16 %v101
    %v254 = vunpack.c.h.b16 %v101
    %v255 = vunpack.c.l.b16 %v102
    %v256 = vunpack.c.h.b16 %v102
    %v257 = vunpack.c.l.b16 %v103
    %v258 = vunpack.c.h.b16 %v103
    %v259 = vunpack.c.l.b16 %v104
    %v260 = vunpack.c.h.b16 %v104
    %v261 = vunpack.c.l.b16 %v105
    %v262 = vunpack.c.h.b16 %v105
    %v263 = vunpack.c.l.b16 %v106
    %v264 = vunpack.c.h.b16 %v106
    %v265 = vunpack.c.l.b16 %v107
    %v266 = vunpack.c.h.b16 %v107
    %v267 = vunpack.c.l.b16 %v108
    %v268 = vunpack.c.h.b16 %v108
    %v269 = vunpack.c.l.b16 %v109
    %v270 = vunpack.c.h.b16 %v109
    %v271 = vunpack.c.l.b16 %v110
    %v272 = vunpack.c.h.b16 %v110
    %v273 = vunpack.c.l.b16 %v111
    %v274 = vunpack.c.h.b16 %v111
    %v275 = vunpack.c.l.b16 %v112
    %v276 = vunpack.c.h.b16 %v112
    %v277 = vunpack.c.l.b16 %v113
    %v278 = vunpack.c.h.b16 %v113
    %v279 = vunpack.c.l.b16 %v114
    %v280 = vunpack.c.h.b16 %v114
    %v281 = vpack.c.b16 %v221, %v217
    %v282 = vpack.c.b16 %v222, %v218
    %v283 = vpack.c.b16 %v223, %v219
    %v284 = vpack.c.b16 %v224, %v220
    %v285 = vpack.c.b16 %v229, %v225
    %v286 = vpack.c.b16 %v230, %v226
    %v287 = vpack.c.b16 %v231, %v227
    %v288 = vpack.c.b16 %v232, %v228
    %v289 = vpack.c.b16 %v237, %v233
    %v290 = vpack.c.b16 %v238, %v234
    %v291 = vpack.c.b16 %v239, %v235
    %v292 = vpack.c.b16 %v240, %v236
    %v293 = vpack.c.b16 %v245, %v241
    %v294 = vpack.c.b16 %v246, %v242
    %v295 = vpack.c.b16 %v247, %v243
    %v296 = vpack.c.b16 %v248, %v244
    %v297 = vpack.c.b16 %v253, %v249
    %v298 = vpack.c.b16 %v254, %v250
    %v299 = vpack.c.b16 %v255, %v251
    %v300 = vpack.c.b16 %v256, %v252
    %v301 = vpack.c.b16 %v261, %v257
    %v302 = vpack.c.b16 %v262, %v258
    %v303 = vpack.c.b16 %v263, %v259
    %v304 = vpack.c.b16 %v264, %v260
    %v305 = vpack.c.b16 %v269, %v265
    %v306 = vpack.c.b16 %v270, %v266
    %v307 = vpack.c.b16 %v271, %v267
    %v308 = vpack.c.b16 %v272, %v268
    %v309 = vpack.c.b16 %v277, %v273
    %v310 = vpack.c.b16 %v278, %v274
    %v311 = vpack.c.b16 %v279, %v275
    %v312 = vpack.c.b16 %v280, %v276
    %345 = vmatprep.subr.bf16.mxu0 %v282
    %346 = vmatpush1.bf16.msra.mxu0 %v281
    %347 = vmatprep.subr.bf16.mxu0 %v286
    %348 = vmatpush1.bf16.msra.mxu0 %v285
    %349 = vmatprep.subr.bf16.mxu0 %v290
    %350 = vmatpush1.bf16.msra.mxu0 %v289
    %351 = vmatprep.subr.bf16.mxu0 %v294
    %352 = vmatpush1.bf16.msra.mxu0 %v293
    %353 = vmatprep.subr.bf16.mxu0 %v298
    %354 = vmatpush1.bf16.msra.mxu0 %v297
    %355 = vmatprep.subr.bf16.mxu0 %v302
    %356 = vmatpush1.bf16.msra.mxu0 %v301
    %357 = vmatprep.subr.bf16.mxu0 %v306
    %358 = vmatpush1.bf16.msra.mxu0 %v305
    %359 = vmatprep.subr.bf16.mxu0 %v310
    %360 = vmatpush1.bf16.msra.mxu0 %v309
    %361 = vmatprep.subr.bf16.mxu0 0
    %362 = vmatpush1.bf16.msra.mxu0 0
    %363 = vmatprep.subr.bf16.mxu0 0
    %364 = vmatpush1.bf16.msra.mxu0 0
    %365 = vmatprep.subr.bf16.mxu0 0
    %366 = vmatpush1.bf16.msra.mxu0 0
    %367 = vmatprep.subr.bf16.mxu0 0
    %368 = vmatpush1.bf16.msra.mxu0 0
    %369 = vmatprep.subr.bf16.mxu0 0
    %370 = vmatpush1.bf16.msra.mxu0 0
    %371 = vmatprep.subr.bf16.mxu0 0
    %372 = vmatpush1.bf16.msra.mxu0 0
    %373 = vmatprep.subr.bf16.mxu0 0
    %374 = vmatpush1.bf16.msra.mxu0 0
    %375 = vmatprep.subr.bf16.mxu0 0
    %376 = vmatpush1.bf16.msra.mxu0 0
    %377 = vmatprep.mubr.bf16.mxu0 0
    %378 = vmatmul.mubr.bf16.gmra.mrb[0].mxu0 %v169
    %v379 = vpop.f32.mrb[0].mxu0
    %v380 = vadd.f32 %v120, %v379
    %v381 = vpop.f32.mrb[0].mxu0
    %v382 = vadd.f32 %v124, %v381
    %v383 = vpop.f32.mrb[0].mxu0
    %v384 = vadd.f32 %v120, %v383
    %v385 = vpop.f32.mrb[0].mxu0
    %v386 = vadd.f32 %v124, %v385
    %387 = vmatprep.mubr.bf16.mxu0 0
    %388 = vmatmul.mubr.bf16.gmra.mrb[0].mxu0 %v170
    %v389 = vpop.f32.mrb[0].mxu0
    %v390 = vadd.f32 %v120, %v389
    %v391 = vpop.f32.mrb[0].mxu0
    %v392 = vadd.f32 %v124, %v391
    %v393 = vpop.f32.mrb[0].mxu0
    %v394 = vadd.f32 %v120, %v393
    %v395 = vpop.f32.mrb[0].mxu0
    %v396 = vadd.f32 %v124, %v395
    %397 = vmatprep.mubr.bf16.mxu0 0
    %398 = vmatmul.mubr.bf16.gmra.mrb[0].mxu0 %v171
    %v399 = vpop.f32.mrb[0].mxu0
    %v400 = vadd.f32 %v120, %v399
    %v401 = vpop.f32.mrb[0].mxu0
    %v402 = vadd.f32 %v124, %v401
    %v403 = vpop.f32.mrb[0].mxu0
    %v404 = vadd.f32 %v120, %v403
    %v405 = vpop.f32.mrb[0].mxu0
    %v406 = vadd.f32 %v124, %v405
    %407 = vmatprep.mubr.bf16.mxu0 0
    %408 = vmatmul.mubr.bf16.gmra.mrb[0].mxu0 %v172
    %v409 = vpop.f32.mrb[0].mxu0
    %v410 = vadd.f32 %v120, %v409
    %v411 = vpop.f32.mrb[0].mxu0
    %v412 = vadd.f32 %v124, %v411
    %v413 = vpop.f32.mrb[0].mxu0
    %v414 = vadd.f32 %v120, %v413
    %v415 = vpop.f32.mrb[0].mxu0
    %v416 = vadd.f32 %v124, %v415
    %417 = vmatprep.mubr.bf16.mxu0 0
    %418 = vmatmul.mubr.bf16.gmra.mrb[0].mxu0 %v173
    %v419 = vpop.f32.mrb[0].mxu0
    %v420 = vadd.f32 %v120, %v419
    %v421 = vpop.f32.mrb[0].mxu0
    %v422 = vadd.f32 %v124, %v421
    %v423 = vpop.f32.mrb[0].mxu0
    %v424 = vadd.f32 %v120, %v423
    %v425 = vpop.f32.mrb[0].mxu0
    %v426 = vadd.f32 %v124, %v425
    %427 = vmatprep.mubr.bf16.mxu0 0
    %428 = vmatmul.mubr.bf16.gmra.mrb[0].mxu0 %v174
    %v429 = vpop.f32.mrb[0].mxu0
    %v430 = vadd.f32 %v120, %v429
    %v431 = vpop.f32.mrb[0].mxu0
    %v432 = vadd.f32 %v124, %v431
    %v433 = vpop.f32.mrb[0].mxu0
    %v434 = vadd.f32 %v120, %v433
    %v435 = vpop.f32.mrb[0].mxu0
    %v436 = vadd.f32 %v124, %v435
    %437 = vmatprep.mubr.bf16.mxu0 0
    %438 = vmatmul.mubr.bf16.gmra.mrb[0].mxu0 %v175
    %v439 = vpop.f32.mrb[0].mxu0
    %v440 = vadd.f32 %v120, %v439
    %v441 = vpop.f32.mrb[0].mxu0
    %v442 = vadd.f32 %v124, %v441
    %v443 = vpop.f32.mrb[0].mxu0
    %v444 = vadd.f32 %v120, %v443
    %v445 = vpop.f32.mrb[0].mxu0
    %v446 = vadd.f32 %v124, %v445
    %447 = vmatprep.mubr.bf16.mxu0 0
    %448 = vmatmul.mubr.bf16.gmra.mrb[0].mxu0 %v176
    %v449 = vpop.f32.mrb[0].mxu0
    %v450 = vadd.f32 %v120, %v449
    %v451 = vpop.f32.mrb[0].mxu0
    %v452 = vadd.f32 %v124, %v451
    %v453 = vpop.f32.mrb[0].mxu0
    %v454 = vadd.f32 %v120, %v453
    %v455 = vpop.f32.mrb[0].mxu0
    %v456 = vadd.f32 %v124, %v455
    %457 = vdwg.mxu0
    %458 = vmatprep.subr.bf16.mxu0 %v284
    %459 = vmatpush1.bf16.msra.mxu0 %v283
    %460 = vmatprep.subr.bf16.mxu0 %v288
    %461 = vmatpush1.bf16.msra.mxu0 %v287
    %462 = vmatprep.subr.bf16.mxu0 %v292
    %463 = vmatpush1.bf16.msra.mxu0 %v291
    %464 = vmatprep.subr.bf16.mxu0 %v296
    %465 = vmatpush1.bf16.msra.mxu0 %v295
    %466 = vmatprep.subr.bf16.mxu0 %v300
    %467 = vmatpush1.bf16.msra.mxu0 %v299
    %468 = vmatprep.subr.bf16.mxu0 %v304
    %469 = vmatpush1.bf16.msra.mxu0 %v303
    %470 = vmatprep.subr.bf16.mxu0 %v308
    %471 = vmatpush1.bf16.msra.mxu0 %v307
    %472 = vmatprep.subr.bf16.mxu0 %v312
    %473 = vmatpush1.bf16.msra.mxu0 %v311
    %474 = vmatprep.subr.bf16.mxu0 0
    %475 = vmatpush1.bf16.msra.mxu0 0
    %476 = vmatprep.subr.bf16.mxu0 0
    %477 = vmatpush1.bf16.msra.mxu0 0
    %478 = vmatprep.subr.bf16.mxu0 0
    %479 = vmatpush1.bf16.msra.mxu0 0
    %480 = vmatprep.subr.bf16.mxu0 0
    %481 = vmatpush1.bf16.msra.mxu0 0
    %482 = vmatprep.subr.bf16.mxu0 0
    %483 = vmatpush1.bf16.msra.mxu0 0
    %484 = vmatprep.subr.bf16.mxu0 0
    %485 = vmatpush1.bf16.msra.mxu0 0
    %486 = vmatprep.subr.bf16.mxu0 0
    %487 = vmatpush1.bf16.msra.mxu0 0
    %488 = vmatprep.subr.bf16.mxu0 0
    %489 = vmatpush1.bf16.msra.mxu0 0
    %490 = vmatprep.mubr.bf16.mxu0 0
    %491 = vmatmul.mubr.bf16.gmra.mrb[0].mxu0 %v169
    %v492 = vpop.f32.mrb[0].mxu0
    %v493 = vadd.f32 %v128, %v492
    %v494 = vpop.f32.mrb[0].mxu0
    %v495 = vadd.f32 %v132, %v494
    %v496 = vpop.f32.mrb[0].mxu0
    %v497 = vadd.f32 %v128, %v496
    %v498 = vpop.f32.mrb[0].mxu0
    %v499 = vadd.f32 %v132, %v498
    %500 = vmatprep.mubr.bf16.mxu0 0
    %501 = vmatmul.mubr.bf16.gmra.mrb[0].mxu0 %v170
    %v502 = vpop.f32.mrb[0].mxu0
    %v503 = vadd.f32 %v128, %v502
    %v504 = vpop.f32.mrb[0].mxu0
    %v505 = vadd.f32 %v132, %v504
    %v506 = vpop.f32.mrb[0].mxu0
    %v507 = vadd.f32 %v128, %v506
    %v508 = vpop.f32.mrb[0].mxu0
    %v509 = vadd.f32 %v132, %v508
    %510 = vmatprep.mubr.bf16.mxu0 0
    %511 = vmatmul.mubr.bf16.gmra.mrb[0].mxu0 %v171
    %v512 = vpop.f32.mrb[0].mxu0
    %v513 = vadd.f32 %v128, %v512
    %v514 = vpop.f32.mrb[0].mxu0
    %v515 = vadd.f32 %v132, %v514
    %v516 = vpop.f32.mrb[0].mxu0
    %v517 = vadd.f32 %v128, %v516
    %v518 = vpop.f32.mrb[0].mxu0
    %v519 = vadd.f32 %v132, %v518
    %520 = vmatprep.mubr.bf16.mxu0 0
    %521 = vmatmul.mubr.bf16.gmra.mrb[0].mxu0 %v172
    %v522 = vpop.f32.mrb[0].mxu0
    %v523 = vadd.f32 %v128, %v522
    %v524 = vpop.f32.mrb[0].mxu0
    %v525 = vadd.f32 %v132, %v524
    %v526 = vpop.f32.mrb[0].mxu0
    %v527 = vadd.f32 %v128, %v526
    %v528 = vpop.f32.mrb[0].mxu0
    %v529 = vadd.f32 %v132, %v528
    %530 = vmatprep.mubr.bf16.mxu0 0
    %531 = vmatmul.mubr.bf16.gmra.mrb[0].mxu0 %v173
    %v532 = vpop.f32.mrb[0].mxu0
    %v533 = vadd.f32 %v128, %v532
    %v534 = vpop.f32.mrb[0].mxu0
    %v535 = vadd.f32 %v132, %v534
    %v536 = vpop.f32.mrb[0].mxu0
    %v537 = vadd.f32 %v128, %v536
    %v538 = vpop.f32.mrb[0].mxu0
    %v539 = vadd.f32 %v132, %v538
    %540 = vmatprep.mubr.bf16.mxu0 0
    %541 = vmatmul.mubr.bf16.gmra.mrb[0].mxu0 %v174
    %v542 = vpop.f32.mrb[0].mxu0
    %v543 = vadd.f32 %v128, %v542
    %v544 = vpop.f32.mrb[0].mxu0
    %v545 = vadd.f32 %v132, %v544
    %v546 = vpop.f32.mrb[0].mxu0
    %v547 = vadd.f32 %v128, %v546
    %v548 = vpop.f32.mrb[0].mxu0
    %v549 = vadd.f32 %v132, %v548
    %550 = vmatprep.mubr.bf16.mxu0 0
    %551 = vmatmul.mubr.bf16.gmra.mrb[0].mxu0 %v175
    %v552 = vpop.f32.mrb[0].mxu0
    %v553 = vadd.f32 %v128, %v552
    %v554 = vpop.f32.mrb[0].mxu0
    %v555 = vadd.f32 %v132, %v554
    %v556 = vpop.f32.mrb[0].mxu0
    %v557 = vadd.f32 %v128, %v556
    %v558 = vpop.f32.mrb[0].mxu0
    %v559 = vadd.f32 %v132, %v558
    %560 = vmatprep.mubr.bf16.mxu0 0
    %561 = vmatmul.mubr.bf16.gmra.mrb[0].mxu0 %v176
    %v562 = vpop.f32.mrb[0].mxu0
    %v563 = vadd.f32 %v128, %v562
    %v564 = vpop.f32.mrb[0].mxu0
    %v565 = vadd.f32 %v132, %v564
    %v566 = vpop.f32.mrb[0].mxu0
    %v567 = vadd.f32 %v128, %v566
    %v568 = vpop.f32.mrb[0].mxu0
    %v569 = vadd.f32 %v132, %v568
    %570 = vdwg.mxu0
    %571 = vst [vmem:[#allocation2] sm:$0xff] %v380
    %572 = vst [vmem:[#allocation2 + $0x8] sm:$0xff] %v382
    %573 = vst [vmem:[#allocation2 + $0x10] sm:$0xff] %v493
    %574 = vst [vmem:[#allocation2 + $0x18] sm:$0xff] %v495
    %575 = vst [vmem:[#allocation2 + $0x20] sm:$0xff] %v384
    %576 = vst [vmem:[#allocation2 + $0x28] sm:$0xff] %v386
    %577 = vst [vmem:[#allocation2 + $0x30] sm:$0xff] %v497
    %578 = vst [vmem:[#allocation2 + $0x38] sm:$0xff] %v499
    %579 = vst [vmem:[#allocation2 + $0x40] sm:$0xff] %v390
    %580 = vst [vmem:[#allocation2 + $0x48] sm:$0xff] %v392
    %581 = vst [vmem:[#allocation2 + $0x50] sm:$0xff] %v503
    %582 = vst [vmem:[#allocation2 + $0x58] sm:$0xff] %v505
    %583 = vst [vmem:[#allocation2 + $0x60] sm:$0xff] %v394
    %584 = vst [vmem:[#allocation2 + $0x68] sm:$0xff] %v396
    %585 = vst [vmem:[#allocation2 + $0x70] sm:$0xff] %v507
    %586 = vst [vmem:[#allocation2 + $0x78] sm:$0xff] %v509
    %587 = vst [vmem:[#allocation2 + $0x80] sm:$0xff] %v400
    %588 = vst [vmem:[#allocation2 + $0x88] sm:$0xff] %v402
    %589 = vst [vmem:[#allocation2 + $0x90] sm:$0xff] %v513
    %590 = vst [vmem:[#allocation2 + $0x98] sm:$0xff] %v515
    %591 = vst [vmem:[#allocation2 + $0xa0] sm:$0xff] %v404
    %592 = vst [vmem:[#allocation2 + $0xa8] sm:$0xff] %v406
    %593 = vst [vmem:[#allocation2 + $0xb0] sm:$0xff] %v517
    %594 = vst [vmem:[#allocation2 + $0xb8] sm:$0xff] %v519
    %595 = vst [vmem:[#allocation2 + $0xc0] sm:$0xff] %v410
    %596 = vst [vmem:[#allocation2 + $0xc8] sm:$0xff] %v412
    %597 = vst [vmem:[#allocation2 + $0xd0] sm:$0xff] %v523
    %598 = vst [vmem:[#allocation2 + $0xd8] sm:$0xff] %v525
    %599 = vst [vmem:[#allocation2 + $0xe0] sm:$0xff] %v414
    %600 = vst [vmem:[#allocation2 + $0xe8] sm:$0xff] %v416
    %601 = vst [vmem:[#allocation2 + $0xf0] sm:$0xff] %v527
    %602 = vst [vmem:[#allocation2 + $0xf8] sm:$0xff] %v529
    %603 = vst [vmem:[#allocation2 + $0x100] sm:$0xff] %v420
    %604 = vst [vmem:[#allocation2 + $0x108] sm:$0xff] %v422
    %605 = vst [vmem:[#allocation2 + $0x110] sm:$0xff] %v533
    %606 = vst [vmem:[#allocation2 + $0x118] sm:$0xff] %v535
    %607 = vst [vmem:[#allocation2 + $0x120] sm:$0xff] %v424
    %608 = vst [vmem:[#allocation2 + $0x128] sm:$0xff] %v426
    %609 = vst [vmem:[#allocation2 + $0x130] sm:$0xff] %v537
    %610 = vst [vmem:[#allocation2 + $0x138] sm:$0xff] %v539
    %611 = vst [vmem:[#allocation2 + $0x140] sm:$0xff] %v430
    %612 = vst [vmem:[#allocation2 + $0x148] sm:$0xff] %v432
    %613 = vst [vmem:[#allocation2 + $0x150] sm:$0xff] %v543
    %614 = vst [vmem:[#allocation2 + $0x158] sm:$0xff] %v545
    %615 = vst [vmem:[#allocation2 + $0x160] sm:$0xff] %v434
    %616 = vst [vmem:[#allocation2 + $0x168] sm:$0xff] %v436
    %617 = vst [vmem:[#allocation2 + $0x170] sm:$0xff] %v547
    %618 = vst [vmem:[#allocation2 + $0x178] sm:$0xff] %v549
    %619 = vst [vmem:[#allocation2 + $0x180] sm:$0xff] %v440
    %620 = vst [vmem:[#allocation2 + $0x188] sm:$0xff] %v442
    %621 = vst [vmem:[#allocation2 + $0x190] sm:$0xff] %v553
    %622 = vst [vmem:[#allocation2 + $0x198] sm:$0xff] %v555
    %623 = vst [vmem:[#allocation2 + $0x1a0] sm:$0xff] %v444
    %624 = vst [vmem:[#allocation2 + $0x1a8] sm:$0xff] %v446
    %625 = vst [vmem:[#allocation2 + $0x1b0] sm:$0xff] %v557
    %626 = vst [vmem:[#allocation2 + $0x1b8] sm:$0xff] %v559
    %627 = vst [vmem:[#allocation2 + $0x1c0] sm:$0xff] %v450
    %628 = vst [vmem:[#allocation2 + $0x1c8] sm:$0xff] %v452
    %629 = vst [vmem:[#allocation2 + $0x1d0] sm:$0xff] %v563
    %630 = vst [vmem:[#allocation2 + $0x1d8] sm:$0xff] %v565
    %631 = vst [vmem:[#allocation2 + $0x1e0] sm:$0xff] %v454
    %632 = vst [vmem:[#allocation2 + $0x1e8] sm:$0xff] %v456
    %633 = vst [vmem:[#allocation2 + $0x1f0] sm:$0xff] %v567
    %634 = vst [vmem:[#allocation2 + $0x1f8] sm:$0xff] %v569
    %635 = vst [vmem:[#allocation3] sm:$0xff] 0.0
    %636 = vst [vmem:[#allocation4] sm:$0xff] 0.0
    %v637 = vld [vmem:[%s2] sm:$0xff]
    %s638 = sld [smem:[#allocation5]]
    // While loop
    $region38: #{string_lstm_forward.1} parent=1 // loop_pre_header
      _
    $region39: #{string_lstm_forward.1} parent=1 // loop_header
      %s640 = sphi 0, %s642
      %p641 = scmp.ge.s32.totalorder %s640, %s638
    $region40: #{string_lstm_forward.1} parent=1 // loop_header_branch
      %644 = sbr.rel (%p641) target = $region44
    $region41: #{string_lstm_forward.1} parent=1 // loop_body
      %s645 = smul.u32 %s640, 8
      %s646 = sshra.s32 %s645, 3
      %s647 = sand.u32 %s645, 7
      %s648 = smul.u32 %s646, 4
      %s649 = smul.addr %s648, 8
      %s650 = scalar_lea.vmem [#allocation2], %s649
      %v651 = vld [vmem:[%s650] sm:$0xff]
      %v652 = vld [vmem:[%s650 + $0x8] sm:$0xff]
      %v653 = vld [vmem:[%s650 + $0x10] sm:$0xff]
      %v654 = vld [vmem:[%s650 + $0x18] sm:$0xff]
      %v655 = vld [vmem:[#allocation3] sm:$0xff]
      %v656 = vpack.c.bf16 %v655, %v655
      %v657 = vld [vmem:[#allocation11] sm:$0xff]
      %v658 = vld [vmem:[#allocation11 + $0x8] sm:$0xff]
      %v659 = vld [vmem:[#allocation11 + $0x10] sm:$0xff]
      %v660 = vld [vmem:[#allocation11 + $0x18] sm:$0xff]
      %v661 = vld [vmem:[#allocation11 + $0x20] sm:$0xff]
      %v662 = vld [vmem:[#allocation11 + $0x28] sm:$0xff]
      %v663 = vld [vmem:[#allocation11 + $0x30] sm:$0xff]
      %v664 = vld [vmem:[#allocation11 + $0x38] sm:$0xff]
      %v665 = vld [vmem:[#allocation11 + $0x40] sm:$0xff]
      %v666 = vld [vmem:[#allocation11 + $0x48] sm:$0xff]
      %v667 = vld [vmem:[#allocation11 + $0x50] sm:$0xff]
      %v668 = vld [vmem:[#allocation11 + $0x58] sm:$0xff]
      %v669 = vld [vmem:[#allocation11 + $0x60] sm:$0xff]
      %v670 = vld [vmem:[#allocation11 + $0x68] sm:$0xff]
      %v671 = vld [vmem:[#allocation11 + $0x70] sm:$0xff]
      %v672 = vld [vmem:[#allocation11 + $0x78] sm:$0xff]
      %v673 = vld [vmem:[#allocation11 + $0x80] sm:$0xff]
      %v674 = vld [vmem:[#allocation11 + $0x88] sm:$0xff]
      %v675 = vld [vmem:[#allocation11 + $0x90] sm:$0xff]
      %v676 = vld [vmem:[#allocation11 + $0x98] sm:$0xff]
      %v677 = vld [vmem:[#allocation11 + $0xa0] sm:$0xff]
      %v678 = vld [vmem:[#allocation11 + $0xa8] sm:$0xff]
      %v679 = vld [vmem:[#allocation11 + $0xb0] sm:$0xff]
      %v680 = vld [vmem:[#allocation11 + $0xb8] sm:$0xff]
      %v681 = vld [vmem:[#allocation11 + $0xc0] sm:$0xff]
      %v682 = vld [vmem:[#allocation11 + $0xc8] sm:$0xff]
      %v683 = vld [vmem:[#allocation11 + $0xd0] sm:$0xff]
      %v684 = vld [vmem:[#allocation11 + $0xd8] sm:$0xff]
      %v685 = vld [vmem:[#allocation11 + $0xe0] sm:$0xff]
      %v686 = vld [vmem:[#allocation11 + $0xe8] sm:$0xff]
      %v687 = vld [vmem:[#allocation11 + $0xf0] sm:$0xff]
      %v688 = vld [vmem:[#allocation11 + $0xf8] sm:$0xff]
      %v721 = vunpack.c.l.b16 %v657
      %v722 = vunpack.c.h.b16 %v657
      %v723 = vunpack.c.l.b16 %v658
      %v724 = vunpack.c.h.b16 %v658
      %v725 = vunpack.c.l.b16 %v659
      %v726 = vunpack.c.h.b16 %v659
      %v727 = vunpack.c.l.b16 %v660
      %v728 = vunpack.c.h.b16 %v660
      %v729 = vunpack.c.l.b16 %v661
      %v730 = vunpack.c.h.b16 %v661
      %v731 = vunpack.c.l.b16 %v662
      %v732 = vunpack.c.h.b16 %v662
      %v733 = vunpack.c.l.b16 %v663
      %v734 = vunpack.c.h.b16 %v663
      %v735 = vunpack.c.l.b16 %v664
      %v736 = vunpack.c.h.b16 %v664
      %v737 = vunpack.c.l.b16 %v665
      %v738 = vunpack.c.h.b16 %v665
      %v739 = vunpack.c.l.b16 %v666
      %v740 = vunpack.c.h.b16 %v666
      %v741 = vunpack.c.l.b16 %v667
      %v742 = vunpack.c.h.b16 %v667
      %v743 = vunpack.c.l.b16 %v668
      %v744 = vunpack.c.h.b16 %v668
      %v745 = vunpack.c.l.b16 %v669
      %v746 = vunpack.c.h.b16 %v669
      %v747 = vunpack.c.l.b16 %v670
      %v748 = vunpack.c.h.b16 %v670
      %v749 = vunpack.c.l.b16 %v671
      %v750 = vunpack.c.h.b16 %v671
      %v751 = vunpack.c.l.b16 %v672
      %v752 = vunpack.c.h.b16 %v672
      %v753 = vunpack.c.l.b16 %v673
      %v754 = vunpack.c.h.b16 %v673
      %v755 = vunpack.c.l.b16 %v674
      %v756 = vunpack.c.h.b16 %v674
      %v757 = vunpack.c.l.b16 %v675
      %v758 = vunpack.c.h.b16 %v675
      %v759 = vunpack.c.l.b16 %v676
      %v760 = vunpack.c.h.b16 %v676
      %v761 = vunpack.c.l.b16 %v677
      %v762 = vunpack.c.h.b16 %v677
      %v763 = vunpack.c.l.b16 %v678
      %v764 = vunpack.c.h.b16 %v678
      %v765 = vunpack.c.l.b16 %v679
      %v766 = vunpack.c.h.b16 %v679
      %v767 = vunpack.c.l.b16 %v680
      %v768 = vunpack.c.h.b16 %v680
      %v769 = vunpack.c.l.b16 %v681
      %v770 = vunpack.c.h.b16 %v681
      %v771 = vunpack.c.l.b16 %v682
      %v772 = vunpack.c.h.b16 %v682
      %v773 = vunpack.c.l.b16 %v683
      %v774 = vunpack.c.h.b16 %v683
      %v775 = vunpack.c.l.b16 %v684
      %v776 = vunpack.c.h.b16 %v684
      %v777 = vunpack.c.l.b16 %v685
      %v778 = vunpack.c.h.b16 %v685
      %v779 = vunpack.c.l.b16 %v686
      %v780 = vunpack.c.h.b16 %v686
      %v781 = vunpack.c.l.b16 %v687
      %v782 = vunpack.c.h.b16 %v687
      %v783 = vunpack.c.l.b16 %v688
      %v784 = vunpack.c.h.b16 %v688
      %v785 = vpack.c.b16 %v725, %v721
      %v786 = vpack.c.b16 %v726, %v722
      %v787 = vpack.c.b16 %v727, %v723
      %v788 = vpack.c.b16 %v728, %v724
      %v789 = vpack.c.b16 %v733, %v729
      %v790 = vpack.c.b16 %v734, %v730
      %v791 = vpack.c.b16 %v735, %v731
      %v792 = vpack.c.b16 %v736, %v732
      %v793 = vpack.c.b16 %v741, %v737
      %v794 = vpack.c.b16 %v742, %v738
      %v795 = vpack.c.b16 %v743, %v739
      %v796 = vpack.c.b16 %v744, %v740
      %v797 = vpack.c.b16 %v749, %v745
      %v798 = vpack.c.b16 %v750, %v746
      %v799 = vpack.c.b16 %v751, %v747
      %v800 = vpack.c.b16 %v752, %v748
      %v801 = vpack.c.b16 %v757, %v753
      %v802 = vpack.c.b16 %v758, %v754
      %v803 = vpack.c.b16 %v759, %v755
      %v804 = vpack.c.b16 %v760, %v756
      %v805 = vpack.c.b16 %v765, %v761
      %v806 = vpack.c.b16 %v766, %v762
      %v807 = vpack.c.b16 %v767, %v763
      %v808 = vpack.c.b16 %v768, %v764
      %v809 = vpack.c.b16 %v773, %v769
      %v810 = vpack.c.b16 %v774, %v770
      %v811 = vpack.c.b16 %v775, %v771
      %v812 = vpack.c.b16 %v776, %v772
      %v813 = vpack.c.b16 %v781, %v777
      %v814 = vpack.c.b16 %v782, %v778
      %v815 = vpack.c.b16 %v783, %v779
      %v816 = vpack.c.b16 %v784, %v780
      %849 = vmatprep.subr.bf16.mxu0 %v786
      %850 = vmatpush1.bf16.msra.mxu0 %v785
      %851 = vmatprep.subr.bf16.mxu0 %v790
      %852 = vmatpush1.bf16.msra.mxu0 %v789
      %853 = vmatprep.subr.bf16.mxu0 %v794
      %854 = vmatpush1.bf16.msra.mxu0 %v793
      %855 = vmatprep.subr.bf16.mxu0 %v798
      %856 = vmatpush1.bf16.msra.mxu0 %v797
      %857 = vmatprep.subr.bf16.mxu0 %v802
      %858 = vmatpush1.bf16.msra.mxu0 %v801
      %859 = vmatprep.subr.bf16.mxu0 %v806
      %860 = vmatpush1.bf16.msra.mxu0 %v805
      %861 = vmatprep.subr.bf16.mxu0 %v810
      %862 = vmatpush1.bf16.msra.mxu0 %v809
      %863 = vmatprep.subr.bf16.mxu0 %v814
      %864 = vmatpush1.bf16.msra.mxu0 %v813
      %865 = vmatprep.subr.bf16.mxu0 0
      %866 = vmatpush1.bf16.msra.mxu0 0
      %867 = vmatprep.subr.bf16.mxu0 0
      %868 = vmatpush1.bf16.msra.mxu0 0
      %869 = vmatprep.subr.bf16.mxu0 0
      %870 = vmatpush1.bf16.msra.mxu0 0
      %871 = vmatprep.subr.bf16.mxu0 0
      %872 = vmatpush1.bf16.msra.mxu0 0
      %873 = vmatprep.subr.bf16.mxu0 0
      %874 = vmatpush1.bf16.msra.mxu0 0
      %875 = vmatprep.subr.bf16.mxu0 0
      %876 = vmatpush1.bf16.msra.mxu0 0
      %877 = vmatprep.subr.bf16.mxu0 0
      %878 = vmatpush1.bf16.msra.mxu0 0
      %879 = vmatprep.subr.bf16.mxu0 0
      %880 = vmatpush1.bf16.msra.mxu0 0
      %881 = vmatprep.mubr.bf16.mxu0 0
      %882 = vmatmul.mubr.bf16.gmra.mrb[0].mxu0 %v656
      %v883 = vpop.f32.mrb[0].mxu0
      %v884 = vadd.f32 0.0, %v883
      %v885 = vpop.f32.mrb[0].mxu0
      %v886 = vadd.f32 0.0, %v885
      %v887 = vpop.f32.mrb[0].mxu0
      %v888 = vpop.f32.mrb[0].mxu0
      %889 = vdwg.mxu0
      %890 = vmatprep.subr.bf16.mxu0 %v788
      %891 = vmatpush1.bf16.msra.mxu0 %v787
      %892 = vmatprep.subr.bf16.mxu0 %v792
      %893 = vmatpush1.bf16.msra.mxu0 %v791
      %894 = vmatprep.subr.bf16.mxu0 %v796
      %895 = vmatpush1.bf16.msra.mxu0 %v795
      %896 = vmatprep.subr.bf16.mxu0 %v800
      %897 = vmatpush1.bf16.msra.mxu0 %v799
      %898 = vmatprep.subr.bf16.mxu0 %v804
      %899 = vmatpush1.bf16.msra.mxu0 %v803
      %900 = vmatprep.subr.bf16.mxu0 %v808
      %901 = vmatpush1.bf16.msra.mxu0 %v807
      %902 = vmatprep.subr.bf16.mxu0 %v812
      %903 = vmatpush1.bf16.msra.mxu0 %v811
      %904 = vmatprep.subr.bf16.mxu0 %v816
      %905 = vmatpush1.bf16.msra.mxu0 %v815
      %906 = vmatprep.subr.bf16.mxu0 0
      %907 = vmatpush1.bf16.msra.mxu0 0
      %908 = vmatprep.subr.bf16.mxu0 0
      %909 = vmatpush1.bf16.msra.mxu0 0
      %910 = vmatprep.subr.bf16.mxu0 0
      %911 = vmatpush1.bf16.msra.mxu0 0
      %912 = vmatprep.subr.bf16.mxu0 0
      %913 = vmatpush1.bf16.msra.mxu0 0
      %914 = vmatprep.subr.bf16.mxu0 0
      %915 = vmatpush1.bf16.msra.mxu0 0
      %916 = vmatprep.subr.bf16.mxu0 0
      %917 = vmatpush1.bf16.msra.mxu0 0
      %918 = vmatprep.subr.bf16.mxu0 0
      %919 = vmatpush1.bf16.msra.mxu0 0
      %920 = vmatprep.subr.bf16.mxu0 0
      %921 = vmatpush1.bf16.msra.mxu0 0
      %922 = vmatprep.mubr.bf16.mxu0 0
      %923 = vmatmul.mubr.bf16.gmra.mrb[0].mxu0 %v656
      %v924 = vpop.f32.mrb[0].mxu0
      %v925 = vadd.f32 0.0, %v924
      %v926 = vpop.f32.mrb[0].mxu0
      %v927 = vadd.f32 0.0, %v926
      %v928 = vpop.f32.mrb[0].mxu0
      %v929 = vpop.f32.mrb[0].mxu0
      %930 = vdwg.mxu0
      %v931 = vadd.f32 %v651, %v884
      %v932 = vadd.f32 %v652, %v886
      %v933 = vadd.f32 %v653, %v925
      %v934 = vadd.f32 %v654, %v927
      %v935 = vxor.u32 %v931, 2147483648
      %v936 = vmul.f32 %v935, 1.442695
      %v937 = vpow.pop %v936
      %v938 = vadd.f32 %v937, 1.0
      %v939 = vrcp.pop %v938
      %v940 = vmul.f32 1.0, %v939
      %v941 = vxor.u32 %v932, 2147483648
      %v942 = vmul.f32 %v941, 1.442695
      %v943 = vpow.pop %v942
      %v944 = vadd.f32 %v943, 1.0
      %v945 = vrcp.pop %v944
      %v946 = vmul.f32 1.0, %v945
      %v947 = vtanh.pop %v933
      %v948 = vxor.u32 %v934, 2147483648
      %v949 = vmul.f32 %v948, 1.442695
      %v950 = vpow.pop %v949
      %v951 = vadd.f32 %v950, 1.0
      %v952 = vrcp.pop %v951
      %v953 = vmul.f32 1.0, %v952
      %v954 = vld [vmem:[#allocation4] sm:$0xff]
      %v955 = vmul.f32 %v946, %v954
      %v956 = vmul.f32 %v940, %v947
      %v957 = vadd.f32 %v955, %v956
      %v958 = vtanh.pop %v957
      %v959 = vmul.f32 %v953, %v958
      %v960 = vstv %s640
      %vm961 = vcmp.lt.s32.totalorder %v960, %v637
      %v962 = vsel %vm961, 1, 0
      %963 = vset.pattern.permute.xlu0 0
      %964 = vperm.xlu0 %963, %v962
      %v965 = vpop.permute.xlu0 %964
      %vm966 = vcmp.eq.s32.totalorder %v965, 1
      %v967 = vsel %vm966, %v957, %v954
      %968 = vst [vmem:[#allocation4] sm:$0xff] %v967
      %v969 = vld [vmem:[#allocation3] sm:$0xff]
      %v970 = vsel %vm966, %v959, %v969
      %971 = vst [vmem:[#allocation3] sm:$0xff] %v970
    $region42: #{string_lstm_forward.1} parent=1 // loop_footer
      %s642 = sadd.s32 %s640, 1
    $region43: #{string_lstm_forward.1} parent=1 // loop_footer_branch
      %639 = sbr.rel target = $region39
    $region44: #{string_lstm_forward.1} parent=1 // loop_exit
      _
    %v972 = vld [vmem:[#allocation3] sm:$0xff]
    %973 = vst [vmem:[#allocation12] sm:$0xff] %v972
    // Predicated region
    $region45: #{string_lstm_forward.1} parent=1 // pred_check
      _
    $region46: #{string_lstm_forward.1} parent=1 // pred_check_branch
      %975 = sbr.rel (0) target = $region48
    $region47: #{string_lstm_forward.1} parent=1 // pred_region
      %s977 = ssub.s32 128, 128
      %978 = vsyncadd [#allocation8], %s977
      %s980 = sshll.u32 [#allocation12], 4
      %s981 = int_to_ptr.vmem [resolvable:$true] %s980
      %983 = dma.vmem_to_hbm [thread:$0]  %s981, 128, %s6, [#allocation8]
    $region48: #{string_lstm_forward.1} parent=1 // pred_fallthru
      _
    // Predicated region
    $region49: #{string_lstm_forward.1} parent=1 // pred_check
      _
    $region50: #{string_lstm_forward.1} parent=1 // pred_check_branch
      %985 = sbr.rel (0) target = $region52
    $region51: #{string_lstm_forward.1} parent=1 // pred_region
      %986 = dma.done [#allocation8], 128
    $region52: #{string_lstm_forward.1} parent=1 // pred_fallthru
      _
    %987 = vsyncpa [#allocation7], 1
    %988 = vsyncpa [#allocation10], 1
    %989 = vsyncpa [#allocation8], 1

</llo_original>
